<compile_context>
chip_gen: v5e
topology: v5e:2x2
jax: 0.10.0
libtpu: 0.0.40
codegen_flags: <defaults>
</compile_context>

<pallas_src>
import functools

import jax
import jax.numpy as jnp
from jax.experimental import pallas as pl
from jax.experimental.pallas import tpu as pltpu

EPS = 1e-6
_VMEM_LIMIT = 48 * 1024 * 1024


def _stats_kernel(x_ref, sum_ref, sq_ref):
    """Accumulate per-(b, d) sum and sum-of-squares over N tiles."""
    n = pl.program_id(1)

    @pl.when(n == 0)
    def _():
        sum_ref[...] = jnp.zeros_like(sum_ref)
        sq_ref[...] = jnp.zeros_like(sq_ref)

    x = x_ref[...].astype(jnp.float32)                     # (TN, D)
    sum_ref[...] += jnp.sum(x, axis=0, keepdims=True)      # (1, D)
    sq_ref[...] += jnp.sum(x * x, axis=0, keepdims=True)   # (1, D)


def _norm_matmul_kernel(n_inv, x_ref, sum_ref, sq_ref, gamma_ref, beta_ref,
                        w_ref, b_ref, o_ref):
    """Normalize (instance-norm over N) + AdaIN affine + Linear, fused."""
    x = x_ref[...].astype(jnp.float32)                     # (TN, D)

    mean = sum_ref[...] * n_inv                            # (1, D)
    var = sq_ref[...] * n_inv - mean * mean                # biased variance
    rstd = jax.lax.rsqrt(jnp.maximum(var, 0.0) + EPS)      # (1, D), EUP

    gamma = gamma_ref[...].astype(jnp.float32)             # (1, D)
    beta = beta_ref[...].astype(jnp.float32)               # (1, D)
    scale = gamma * rstd
    shift = beta - mean * scale
    y = x * scale + shift                                  # single VPU pass

    # Matmul at the weight dtype (bf16 weights -> bf16-native MXU path);
    # accumulation stays in f32.
    w = w_ref[...]
    out = jnp.dot(y.astype(w.dtype), w, preferred_element_type=jnp.float32)
    out = out + b_ref[...].astype(jnp.float32)             # (TN, D)
    o_ref[...] = out.astype(o_ref.dtype)


def _choose_tile_n(N, D):
    """Largest N-tile that divides N, is a multiple of 8, and keeps an f32
    (TN, D) slab around ~2 MiB (fits v7x VMEM with pipelining headroom)."""
    budget_rows = max(8, (2 * 1024 * 1024) // max(1, 4 * D))
    if N <= budget_rows:
        return N
    tn = (budget_rows // 8) * 8
    while tn >= 8:
        if N % tn == 0:
            return tn
        tn -= 8
    return N  # no multiple-of-8 divisor; fall back to the full slab


def pre_instance_norm(x, adain_weight, adain_bias, lin_w, lin_b):
    """x: (B, N, D); adain_weight/bias: (B*D,) (PyTorch AdaIN layout);
    lin_w: (D, D) stored (in, out); lin_b: (D,)."""
    B, N, D = x.shape
    gamma = adain_weight.reshape(B, 1, D)
    beta = adain_bias.reshape(B, 1, D)
    lin_b2 = lin_b.reshape(1, D)

    tn = _choose_tile_n(N, D)
    n_tiles = N // tn

    # ---- Pass 1: per-(b, d) sum and sum-of-squares over the token axis N ----
    sums, sqs = pl.pallas_call(
        _stats_kernel,
        out_shape=(jax.ShapeDtypeStruct((B, 1, D), jnp.float32),
                   jax.ShapeDtypeStruct((B, 1, D), jnp.float32)),
        grid_spec=pltpu.PrefetchScalarGridSpec(
            num_scalar_prefetch=0,
            grid=(B, n_tiles),
            in_specs=[
                pl.BlockSpec((pl.Squeezed(), tn, D), lambda b, n: (b, n, 0)),
            ],
            out_specs=(
                pl.BlockSpec((pl.Squeezed(), 1, D), lambda b, n: (b, 0, 0)),
                pl.BlockSpec((pl.Squeezed(), 1, D), lambda b, n: (b, 0, 0)),
            ),
        ),
        compiler_params=pltpu.CompilerParams(
            dimension_semantics=("parallel", "arbitrary"),
            vmem_limit_bytes=_VMEM_LIMIT),
    )(x)

    # ---- Pass 2: normalize + AdaIN affine + Linear (fused) ----
    kernel = functools.partial(_norm_matmul_kernel, 1.0 / N)
    out = pl.pallas_call(
        kernel,
        out_shape=jax.ShapeDtypeStruct((B, N, D), x.dtype),
        grid_spec=pltpu.PrefetchScalarGridSpec(
            num_scalar_prefetch=0,
            grid=(B, n_tiles),
            in_specs=[
                pl.BlockSpec((pl.Squeezed(), tn, D), lambda b, n: (b, n, 0)),  # x
                pl.BlockSpec((pl.Squeezed(), 1, D), lambda b, n: (b, 0, 0)),   # sum
                pl.BlockSpec((pl.Squeezed(), 1, D), lambda b, n: (b, 0, 0)),   # sumsq
                pl.BlockSpec((pl.Squeezed(), 1, D), lambda b, n: (b, 0, 0)),   # gamma
                pl.BlockSpec((pl.Squeezed(), 1, D), lambda b, n: (b, 0, 0)),   # beta
                pl.BlockSpec((D, D), lambda b, n: (0, 0)),                     # W (resident)
                pl.BlockSpec((1, D), lambda b, n: (0, 0)),                     # bias
            ],
            out_specs=pl.BlockSpec((pl.Squeezed(), tn, D), lambda b, n: (b, n, 0)),
        ),
        compiler_params=pltpu.CompilerParams(
            dimension_semantics=("parallel", "parallel"),
            vmem_limit_bytes=_VMEM_LIMIT),
    )(x, sums, sqs, gamma, beta, lin_w, lin_b2)
    return out


def _reference(x, adain_weight, adain_bias, lin_w, lin_b):
    B, N, D = x.shape
    xf = x.astype(jnp.float32)
    mean = jnp.mean(xf, axis=1, keepdims=True)                   # (B, 1, D)
    var = jnp.mean((xf - mean) ** 2, axis=1, keepdims=True)      # biased
    x_hat = (xf - mean) / jnp.sqrt(var + EPS)
    gamma = adain_weight.reshape(B, 1, D).astype(jnp.float32)
    beta = adain_bias.reshape(B, 1, D).astype(jnp.float32)
    y = x_hat * gamma + beta
    out = y @ lin_w.astype(jnp.float32) + lin_b.astype(jnp.float32)
    return out.astype(x.dtype)


if __name__ == "__main__":
    B, N, D = 2, 8, 32  # batch, seq, hidden (dim = 32), matching the module

    key = jax.random.PRNGKey(0)
    kx, kw, kb, klw, klb = jax.random.split(key, 5)

    x = jax.random.normal(kx, (B, N, D), dtype=jnp.float32)
    # AdaIN weight/bias are assigned externally in the PyTorch module; they have
    # length B * num_features (channels of the rearranged tensor).
    adain_weight = jax.random.normal(kw, (B * D,), dtype=jnp.float32) * 0.1 + 1.0
    adain_bias = jax.random.normal(kb, (B * D,), dtype=jnp.float32) * 0.1
    # fn = Linear(D, D); weight stored (in, out) i.e. already transposed.
    lin_w = jax.random.normal(klw, (D, D), dtype=jnp.float32) * (1.0 / D ** 0.5)
    lin_b = jax.random.normal(klb, (D,), dtype=jnp.float32) * 0.1

    # f32 path.
    out = jax.block_until_ready(
        pre_instance_norm(x, adain_weight, adain_bias, lin_w, lin_b))
    ref = _reference(x, adain_weight, adain_bias, lin_w, lin_b)
    assert out.shape == (B, N, D)
    assert jnp.allclose(out, ref, atol=1e-4, rtol=1e-4), \
        float(jnp.max(jnp.abs(out - ref)))

    # bf16 path: bf16-native MXU matmul (f32 accumulation), norm math in f32.
    xb = x.astype(jnp.bfloat16)
    gwb = adain_weight.astype(jnp.bfloat16)
    gbb = adain_bias.astype(jnp.bfloat16)
    lwb = lin_w.astype(jnp.bfloat16)
    lbb = lin_b.astype(jnp.bfloat16)
    out_bf16 = jax.block_until_ready(pre_instance_norm(xb, gwb, gbb, lwb, lbb))
    ref_bf16 = _reference(xb, gwb, gbb, lwb, lbb)
    assert out_bf16.dtype == jnp.bfloat16
    assert jnp.allclose(out_bf16.astype(jnp.float32),
                        ref_bf16.astype(jnp.float32), atol=0.1, rtol=0.1)

    print("KERNEL_OK")
</pallas_src>

<mosaic_0001>
module attributes {stable_mosaic.version = 11 : i64} {
  func.func @_stats_kernel(%arg0: i32, %arg1: i32, %arg2: memref<1x8x32xf32, #tpu.memory_space<vmem>>, %arg3: memref<1x1x32xf32, #tpu.memory_space<vmem>>, %arg4: memref<1x1x32xf32, #tpu.memory_space<vmem>>) attributes {dimension_semantics = [#tpu.dimension_semantics<parallel>, #tpu.dimension_semantics<arbitrary>], iteration_bounds = array<i64: 2, 1>, scalar_prefetch = 0 : i64, scratch_operands = 0 : i64, tpu.core_type = #tpu.core_type<tc>, window_params = [{transform_indices = @transform_0, window_bounds = array<i64: 1, 8, 32>}, {transform_indices = @transform_1, window_bounds = array<i64: 1, 1, 32>}, {transform_indices = @transform_2, window_bounds = array<i64: 1, 1, 32>}]} {
    %c0_i32 = arith.constant 0 : i32
    %0 = arith.cmpi eq, %arg1, %c0_i32 : i32
    %1 = arith.extui %0 : i1 to i32
    %c0_i32_0 = arith.constant 0 : i32
    %2 = arith.cmpi ne, %1, %c0_i32_0 : i32
    scf.if %2 {
      %cst_16 = arith.constant 0.000000e+00 : f32
      %22 = vector.broadcast %cst_16 : f32 to vector<1x32xf32>
      %c0_17 = arith.constant 0 : index
      %c0_18 = arith.constant 0 : index
      %c0_19 = arith.constant 0 : index
      %23 = vector.load %arg3[%c0_17, %c0_18, %c0_19] : memref<1x1x32xf32, #tpu.memory_space<vmem>>, vector<1x1x32xf32>
      %24 = vector.shape_cast %23 : vector<1x1x32xf32> to vector<1x32xf32>
      %25 = vector.shape_cast %22 : vector<1x32xf32> to vector<1x1x32xf32>
      tpu.vector_store %arg3[%c0_17, %c0_18, %c0_19], %25 {strides = array<i32>} : memref<1x1x32xf32, #tpu.memory_space<vmem>>, vector<1x1x32xf32>,
      %cst_20 = arith.constant 0.000000e+00 : f32
      %26 = vector.broadcast %cst_20 : f32 to vector<1x32xf32>
      %c0_21 = arith.constant 0 : index
      %c0_22 = arith.constant 0 : index
      %c0_23 = arith.constant 0 : index
      %27 = vector.load %arg4[%c0_21, %c0_22, %c0_23] : memref<1x1x32xf32, #tpu.memory_space<vmem>>, vector<1x1x32xf32>
      %28 = vector.shape_cast %27 : vector<1x1x32xf32> to vector<1x32xf32>
      %29 = vector.shape_cast %26 : vector<1x32xf32> to vector<1x1x32xf32>
      tpu.vector_store %arg4[%c0_21, %c0_22, %c0_23], %29 {strides = array<i32>} : memref<1x1x32xf32, #tpu.memory_space<vmem>>, vector<1x1x32xf32>,
    } else {
    }
    %c0 = arith.constant 0 : index
    %c0_1 = arith.constant 0 : index
    %c0_2 = arith.constant 0 : index
    %3 = vector.load %arg2[%c0, %c0_1, %c0_2] : memref<1x8x32xf32, #tpu.memory_space<vmem>>, vector<1x8x32xf32>
    %4 = vector.shape_cast %3 : vector<1x8x32xf32> to vector<8x32xf32>
    %c0_3 = arith.constant 0 : index
    %c0_4 = arith.constant 0 : index
    %c0_5 = arith.constant 0 : index
    %5 = vector.load %arg3[%c0_3, %c0_4, %c0_5] : memref<1x1x32xf32, #tpu.memory_space<vmem>>, vector<1x1x32xf32>
    %6 = vector.shape_cast %5 : vector<1x1x32xf32> to vector<1x32xf32>
    %cst = arith.constant dense<0.000000e+00> : vector<32xf32>
    %7 = vector.multi_reduction <add>, %4, %cst [0] : vector<8x32xf32> to vector<32xf32>
    %8 = vector.shape_cast %7 : vector<32xf32> to vector<1x32xf32>
    %9 = arith.addf %6, %8 : vector<1x32xf32>
    %c0_6 = arith.constant 0 : index
    %c0_7 = arith.constant 0 : index
    %c0_8 = arith.constant 0 : index
    %10 = vector.load %arg3[%c0_6, %c0_7, %c0_8] : memref<1x1x32xf32, #tpu.memory_space<vmem>>, vector<1x1x32xf32>
    %11 = vector.shape_cast %10 : vector<1x1x32xf32> to vector<1x32xf32>
    %12 = vector.shape_cast %9 : vector<1x32xf32> to vector<1x1x32xf32>
    tpu.vector_store %arg3[%c0_6, %c0_7, %c0_8], %12 {strides = array<i32>} : memref<1x1x32xf32, #tpu.memory_space<vmem>>, vector<1x1x32xf32>,
    %c0_9 = arith.constant 0 : index
    %c0_10 = arith.constant 0 : index
    %c0_11 = arith.constant 0 : index
    %13 = vector.load %arg4[%c0_9, %c0_10, %c0_11] : memref<1x1x32xf32, #tpu.memory_space<vmem>>, vector<1x1x32xf32>
    %14 = vector.shape_cast %13 : vector<1x1x32xf32> to vector<1x32xf32>
    %15 = arith.mulf %4, %4 : vector<8x32xf32>
    %cst_12 = arith.constant dense<0.000000e+00> : vector<32xf32>
    %16 = vector.multi_reduction <add>, %15, %cst_12 [0] : vector<8x32xf32> to vector<32xf32>
    %17 = vector.shape_cast %16 : vector<32xf32> to vector<1x32xf32>
    %18 = arith.addf %14, %17 : vector<1x32xf32>
    %c0_13 = arith.constant 0 : index
    %c0_14 = arith.constant 0 : index
    %c0_15 = arith.constant 0 : index
    %19 = vector.load %arg4[%c0_13, %c0_14, %c0_15] : memref<1x1x32xf32, #tpu.memory_space<vmem>>, vector<1x1x32xf32>
    %20 = vector.shape_cast %19 : vector<1x1x32xf32> to vector<1x32xf32>
    %21 = vector.shape_cast %18 : vector<1x32xf32> to vector<1x1x32xf32>
    tpu.vector_store %arg4[%c0_13, %c0_14, %c0_15], %21 {strides = array<i32>} : memref<1x1x32xf32, #tpu.memory_space<vmem>>, vector<1x1x32xf32>,
    return
  }
  func.func @transform_0(%arg0: i32, %arg1: i32) -> (i32, i32, i32) {
    %c0_i32 = arith.constant 0 : i32
    %c0_i32_0 = arith.constant 0 : i32
    return %arg0, %arg1, %c0_i32 : i32, i32, i32
  }
  func.func @transform_1(%arg0: i32, %arg1: i32) -> (i32, i32, i32) {
    %c0_i32 = arith.constant 0 : i32
    %c0_i32_0 = arith.constant 0 : i32
    %c0_i32_1 = arith.constant 0 : i32
    return %arg0, %c0_i32, %c0_i32_0 : i32, i32, i32
  }
  func.func @transform_2(%arg0: i32, %arg1: i32) -> (i32, i32, i32) {
    %c0_i32 = arith.constant 0 : i32
    %c0_i32_0 = arith.constant 0 : i32
    %c0_i32_1 = arith.constant 0 : i32
    return %arg0, %c0_i32, %c0_i32_0 : i32, i32, i32
  }
}

</mosaic_0001>

<llo_original>
// kernel: tpu_custom_call.1
$region0: #{tpu_custom_call.1}
  #allocation0 [shape = 'u32[]', space=smem, size = 0x4, offset = 0x4, fixed_abs, tag = 'smem constant byte address 0x4 - core index']
  #allocation1 [shape = 'u32[72,128]{1,0:T(1,128)}', space=vmem, size = 0x9000, scoped, tag = 'internal scratch']
  %s0 = inlined_call_operand.hbm [shape: f32[2,8,32], index: 0, kind: input, shape index: {}]
  %s1 = inlined_call_operand.hbm [shape: f32[2,1,32], index: 1, kind: output, shape index: {0}]
  %s2 = inlined_call_operand.hbm [shape: f32[2,1,32], index: 2, kind: output, shape index: {1}]
  %3 = xla_tuple %s1, %s2
  %s4 = sld [smem:[#allocation0]]
  $region53: #{tpu_custom_call.1} parent=0
    _
  %s6 = ssub.s32 1, %s4
  %s7 = scalar_select 0, %s6, %s4
  $region1: #{tpu_custom_call.1} parent=0
    #allocation2 [shape = 'u8[8192]{0}', space=vmem, size = 0x2000, scoped, tag = 'input window, operand 0']
    #allocation3 [shape = 's32[2]{0}', space=sflag, size = 0x8, scoped, tag = 'scoped memory for tpu_custom_call.1']
    #allocation4 [shape = 's32[2]{0}', space=sflag, size = 0x8, scoped, tag = 'scoped memory for tpu_custom_call.1']
    #allocation5 [shape = 'u8[1024]{0}', space=vmem, size = 0x400, scoped, tag = 'output window, operand 0']
    #allocation6 [shape = 'u8[1024]{0}', space=vmem, size = 0x400, scoped, tag = 'output window, operand 1']
    #allocation7 [shape = 's32[2]{0}', space=sflag, size = 0x8, scoped, tag = 'scoped memory for tpu_custom_call.1']
    %8 = vsyncpa [#allocation3], 0
    %s9 = scalar_lea.sflag [#allocation3], 1
    %10 = vsyncpa %s9, 0
    %11 = vsyncpa [#allocation4], 0
    %s12 = scalar_lea.sflag [#allocation4], 1
    %13 = vsyncpa %s12, 0
    %14 = vsyncpa [#allocation7], 0
    %s15 = scalar_lea.sflag [#allocation7], 1
    %16 = vsyncpa %s15, 0
    loop: start=0, step=1, limit=4
    $region2: #{tpu_custom_call.1} parent=1 // loop_pre_header
      _
    $region3: #{tpu_custom_call.1} parent=1 // loop_header
      %s18 = sphi 0, %s22
      %p19 = scmp.ge.s32.totalorder %s18, 4
      %s25 = sphi 0, %s37
      %s26 = sphi 0, %s33
      %s27 = sphi 0, %s25
      %s28 = sphi 0, %s26
      %s29 = sphi 0, %s27
      %s30 = sphi 0, %s28
      %s42 = sphi 0, %s44
      %s45 = sphi 0, %s42
      %s46 = sphi 0, %s45
      %s62 = sphi 0, %s46
      %s68 = sphi 0, %s70
      %s71 = sphi 0, %s68
      %s72 = sphi 0, %s71
      %s88 = sphi 0, %s72
      %s94 = sphi 0, %s96
      %s97 = sphi 0, %s94
      %s98 = sphi 0, %s97
      %s114 = sphi 0, %s98
    $region4: #{tpu_custom_call.1} parent=1 // loop_header_branch
      %21 = sbr.rel (%p19) target = $region8
    $region5: #{tpu_custom_call.1} parent=1 // loop_body
      %s23 = ssub.s32 %s18, 1
      %s24 = ssub.s32 %s18, 2
      %s31 = sadd.s32 1, %s26
      %p32 = scmp.ge.s32.totalorder %s31, 1
      %s33 = scalar_select %p32, 0, %s31
      %s34 = sadd.s32 1, %s25
      %s35 = scalar_select %p32, %s34, %s25
      %p36 = scmp.ge.s32.totalorder %s35, 2
      %s37 = scalar_select %p36, 0, %s35
      %s38 = ssub.s32 %s25, %s37
      %s39 = ssub.s32 %s26, %s33
      %s40 = sor.u32 %s38, %s39
      %p41 = scmp.eq.s32.totalorder %s40, 0
      %s43 = sadd.s32 %s42, 1
      %s44 = scalar_select %p41, %s42, %s43
      %p47 = pneg %p41
      %p48 = scmp.eq.s32.totalorder %s18, 1
      %p49 = por %p47, %p48
      %p50 = scmp.ne.s32.totalorder %s42, %s45
      %p51 = scmp.eq.s32.totalorder %s18, 0
      %p52 = por %p50, %p51
      %p53 = scmp.ne.s32.totalorder %s42, %s45
      %p54 = scmp.eq.s32.totalorder %s23, 1
      %p55 = por %p53, %p54
      %p56 = scmp.ne.s32.totalorder %s45, %s46
      %p57 = scmp.eq.s32.totalorder %s23, 0
      %p58 = por %p56, %p57
      %p59 = scmp.ne.s32.totalorder %s45, %s46
      %p60 = scmp.eq.s32.totalorder %s24, 1
      %p61 = por %p59, %p60
      %p63 = scmp.ne.s32.totalorder %s46, %s62
      %p64 = scmp.eq.s32.totalorder %s24, 0
      %p65 = por %p63, %p64
      %s66 = ssub.s32 %s25, %s37
      %p67 = scmp.eq.s32.totalorder %s66, 0
      %s69 = sadd.s32 %s68, 1
      %s70 = scalar_select %p67, %s68, %s69
      %p73 = pneg %p67
      %p74 = scmp.eq.s32.totalorder %s18, 1
      %p75 = por %p73, %p74
      %p76 = scmp.ne.s32.totalorder %s68, %s71
      %p77 = scmp.eq.s32.totalorder %s18, 0
      %p78 = por %p76, %p77
      %p79 = scmp.ne.s32.totalorder %s68, %s71
      %p80 = scmp.eq.s32.totalorder %s23, 1
      %p81 = por %p79, %p80
      %p82 = scmp.ne.s32.totalorder %s71, %s72
      %p83 = scmp.eq.s32.totalorder %s23, 0
      %p84 = por %p82, %p83
      %p85 = scmp.ne.s32.totalorder %s71, %s72
      %p86 = scmp.eq.s32.totalorder %s24, 1
      %p87 = por %p85, %p86
      %p89 = scmp.ne.s32.totalorder %s72, %s88
      %p90 = scmp.eq.s32.totalorder %s24, 0
      %p91 = por %p89, %p90
      %s92 = ssub.s32 %s25, %s37
      %p93 = scmp.eq.s32.totalorder %s92, 0
      %s95 = sadd.s32 %s94, 1
      %s96 = scalar_select %p93, %s94, %s95
      %p99 = pneg %p93
      %p100 = scmp.eq.s32.totalorder %s18, 1
      %p101 = por %p99, %p100
      %p102 = scmp.ne.s32.totalorder %s94, %s97
      %p103 = scmp.eq.s32.totalorder %s18, 0
      %p104 = por %p102, %p103
      %p105 = scmp.ne.s32.totalorder %s94, %s97
      %p106 = scmp.eq.s32.totalorder %s23, 1
      %p107 = por %p105, %p106
      %p108 = scmp.ne.s32.totalorder %s97, %s98
      %p109 = scmp.eq.s32.totalorder %s23, 0
      %p110 = por %p108, %p109
      %p111 = scmp.ne.s32.totalorder %s97, %s98
      %p112 = scmp.eq.s32.totalorder %s24, 1
      %p113 = por %p111, %p112
      %p115 = scmp.ne.s32.totalorder %s98, %s114
      %p116 = scmp.eq.s32.totalorder %s24, 0
      %p117 = por %p115, %p116
      %p118 = scmp.le.s32.totalorder 1, %s18
      %p119 = scmp.lt.s32.totalorder %s18, 3
      %p120 = pnand %p118, %p119
      %p121 = pneg %p120
      // Predicated region
      $region9: #{tpu_custom_call.1} parent=5 // pred_check
        _
      $region10: #{tpu_custom_call.1} parent=5 // pred_check_branch
        %123 = sbr.rel (%p120) target = $region12
      $region11: #{tpu_custom_call.1} parent=5 // pred_region
        %s124 = ssub.s32 %s18, 1
      $region12: #{tpu_custom_call.1} parent=5 // pred_fallthru
        _
      %p125 = scmp.lt.s32.totalorder %s18, 2
      // Predicated region
      $region13: #{tpu_custom_call.1} parent=5 // pred_check
        %p126 = pneg %p125
      $region14: #{tpu_custom_call.1} parent=5 // pred_check_branch
        %128 = sbr.rel (%p126) target = $region16
      $region15: #{tpu_custom_call.1} parent=5 // pred_region
        // Predicated region
        $region17: #{tpu_custom_call.1} parent=15 // pred_check
          %p129 = pneg %p52
        $region18: #{tpu_custom_call.1} parent=15 // pred_check_branch
          %131 = sbr.rel (%p129) target = $region20
        $region19: #{tpu_custom_call.1} parent=15 // pred_region
          %s132 = sand.u32 %s42, 1
          %s133 = scalar_lea.sflag [#allocation3], %s132
          %s134 = sand.u32 %s42, 1
          %s135 = smul.addr %s134, 8
          %s136 = scalar_lea.vmem [#allocation2], %s135
          %138 = vsyncadd %s133, 0
          %s139 = sadd.s32 %s26, %s25
          %s140 = smul.addr %s139, 8
          %s141 = scalar_lea.hbm %s0, %s140
          %s143 = sshll.u32 %s141, 4
          %s144 = int_to_ptr.hbm [resolvable:$true] %s143
          %s145 = sshll.u32 %s136, 4
          %s146 = int_to_ptr.vmem [resolvable:$true] %s145
          %148 = dma.hbm_to_vmem [thread:$0]  %s144, 128, %s146, %s133
        $region20: #{tpu_custom_call.1} parent=15 // pred_fallthru
          _
      $region16: #{tpu_custom_call.1} parent=5 // pred_fallthru
        _
      %p149 = scmp.le.s32.totalorder 1, %s18
      %p150 = scmp.lt.s32.totalorder %s18, 3
      %p151 = pnand %p149, %p150
      %p152 = pneg %p151
      // Predicated region
      $region21: #{tpu_custom_call.1} parent=5 // pred_check
        _
      $region22: #{tpu_custom_call.1} parent=5 // pred_check_branch
        %154 = sbr.rel (%p151) target = $region24
      $region23: #{tpu_custom_call.1} parent=5 // pred_region
        %s155 = ssub.s32 %s18, 1
        %s156 = sand.u32 %s45, 1
        %s157 = scalar_lea.sflag [#allocation3], %s156
        %s158 = sand.u32 %s45, 1
        %s159 = smul.addr %s158, 8
        %s160 = scalar_lea.vmem [#allocation2], %s159
        // Predicated region
        $region25: #{tpu_custom_call.1} parent=23 // pred_check
          %p161 = pneg %p58
        $region26: #{tpu_custom_call.1} parent=23 // pred_check_branch
          %163 = sbr.rel (%p161) target = $region28
        $region27: #{tpu_custom_call.1} parent=23 // pred_region
          %165 = dma.done %s157, 128
        $region28: #{tpu_custom_call.1} parent=23 // pred_fallthru
          _
        %s166 = sand.u32 %s45, 1
        %s167 = scalar_lea.sflag [#allocation3], %s166
        %s168 = sand.u32 %s45, 1
        %s169 = smul.addr %s168, 8
        %s170 = scalar_lea.vmem [#allocation2], %s169
        %p171 = pneg %p58
        %p172 = pneg %p55
        %p173 = pneg %p84
        %p174 = pneg %p81
        %s175 = sand.u32 %s71, 1
        %s176 = scalar_lea.sflag [#allocation4], %s175
        %s177 = sand.u32 %s71, 1
        %s178 = scalar_lea.vmem [#allocation5], %s177
        %p179 = pneg %p110
        %p180 = pneg %p107
        %s181 = sand.u32 %s97, 1
        %s182 = scalar_lea.sflag [#allocation7], %s181
        %s183 = sand.u32 %s97, 1
        %s184 = scalar_lea.vmem [#allocation6], %s183
        %p185 = scmp.eq.s32.totalorder %s28, 0
        // Predicated region
        $region29: #{tpu_custom_call.1} parent=23 // pred_check
          %p186 = pneg %p185
        $region30: #{tpu_custom_call.1} parent=23 // pred_check_branch
          %188 = sbr.rel (%p186) target = $region32
        $region31: #{tpu_custom_call.1} parent=23 // pred_region
          %vm189 = vcmask 253952
          %190 = vst.msk [vmem:[%s178] sm:$0x1] %vm189, 0.0
          %191 = vst.msk [vmem:[%s184] sm:$0x1] %vm189, 0.0
        $region32: #{tpu_custom_call.1} parent=23 // pred_fallthru
          _
        %v192 = vld [vmem:[%s160] sm:$0xff]
        %v193 = vld [vmem:[%s178] sm:$0x1]
        %vm194 = vcmask 261120
        %v195 = vsel %vm194, %v192, 0.0
        %v196 = vrot.slane %v195, 4
        %v197 = vadd.f32 %v195, %v196
        %v198 = vrot.slane %v197, 2
        %v199 = vadd.f32 %v197, %v198
        %v200 = vrot.slane %v199, 1
        %v201 = vadd.f32 %v199, %v200
        %v202 = vadd.f32 %v193, %v201
        %vm203 = vcmask 253952
        %204 = vst.msk [vmem:[%s178] sm:$0x1] %vm203, %v202
        %v205 = vld [vmem:[%s184] sm:$0x1]
        %v206 = vmul.f32 %v192, %v192
        %v207 = vsel %vm194, %v206, 0.0
        %v208 = vrot.slane %v207, 4
        %v209 = vadd.f32 %v207, %v208
        %v210 = vrot.slane %v209, 2
        %v211 = vadd.f32 %v209, %v210
        %v212 = vrot.slane %v211, 1
        %v213 = vadd.f32 %v211, %v212
        %v214 = vadd.f32 %v205, %v213
        %215 = vst.msk [vmem:[%s184] sm:$0x1] %vm203, %v214
        %s216 = sand.u32 %s71, 1
        %s217 = scalar_lea.sflag [#allocation4], %s216
        %s218 = sand.u32 %s71, 1
        %s219 = scalar_lea.vmem [#allocation5], %s218
        %s220 = sand.u32 %s97, 1
        %s221 = scalar_lea.sflag [#allocation7], %s220
        %s222 = sand.u32 %s97, 1
        %s223 = scalar_lea.vmem [#allocation6], %s222
        // Predicated region
        $region33: #{tpu_custom_call.1} parent=23 // pred_check
          %p224 = pneg %p81
        $region34: #{tpu_custom_call.1} parent=23 // pred_check_branch
          %226 = sbr.rel (%p224) target = $region36
        $region35: #{tpu_custom_call.1} parent=23 // pred_region
          %228 = vsyncadd %s217, 0
          %s229 = scalar_lea.hbm %s1, %s27
          %s231 = sshll.u32 %s219, 4
          %s232 = int_to_ptr.vmem [resolvable:$true] %s231
          %s233 = sshll.u32 %s229, 4
          %s234 = int_to_ptr.hbm [resolvable:$true] %s233
          %236 = dma.vmem_to_hbm [thread:$0]  %s232, 16, %s234, %s217
        $region36: #{tpu_custom_call.1} parent=23 // pred_fallthru
          _
        // Predicated region
        $region37: #{tpu_custom_call.1} parent=23 // pred_check
          %p237 = pneg %p107
        $region38: #{tpu_custom_call.1} parent=23 // pred_check_branch
          %239 = sbr.rel (%p237) target = $region40
        $region39: #{tpu_custom_call.1} parent=23 // pred_region
          %241 = vsyncadd %s221, 0
          %s242 = scalar_lea.hbm %s2, %s27
          %s244 = sshll.u32 %s223, 4
          %s245 = int_to_ptr.vmem [resolvable:$true] %s244
          %s246 = sshll.u32 %s242, 4
          %s247 = int_to_ptr.hbm [resolvable:$true] %s246
          %249 = dma.vmem_to_hbm [thread:$0]  %s245, 16, %s247, %s221
        $region40: #{tpu_custom_call.1} parent=23 // pred_fallthru
          _
      $region24: #{tpu_custom_call.1} parent=5 // pred_fallthru
        _
      %p250 = scmp.le.s32.totalorder 2, %s18
      // Predicated region
      $region41: #{tpu_custom_call.1} parent=5 // pred_check
        %p251 = pneg %p250
      $region42: #{tpu_custom_call.1} parent=5 // pred_check_branch
        %253 = sbr.rel (%p251) target = $region44
      $region43: #{tpu_custom_call.1} parent=5 // pred_region
        %s254 = ssub.s32 %s18, 2
        // Predicated region
        $region45: #{tpu_custom_call.1} parent=43 // pred_check
          %p255 = pneg %p87
        $region46: #{tpu_custom_call.1} parent=43 // pred_check_branch
          %257 = sbr.rel (%p255) target = $region48
        $region47: #{tpu_custom_call.1} parent=43 // pred_region
          %s258 = sand.u32 %s72, 1
          %s259 = scalar_lea.sflag [#allocation4], %s258
          %s260 = sand.u32 %s72, 1
          %s261 = scalar_lea.vmem [#allocation5], %s260
          %263 = dma.done %s259, 16
        $region48: #{tpu_custom_call.1} parent=43 // pred_fallthru
          _
        // Predicated region
        $region49: #{tpu_custom_call.1} parent=43 // pred_check
          %p264 = pneg %p113
        $region50: #{tpu_custom_call.1} parent=43 // pred_check_branch
          %266 = sbr.rel (%p264) target = $region52
        $region51: #{tpu_custom_call.1} parent=43 // pred_region
          %s267 = sand.u32 %s98, 1
          %s268 = scalar_lea.sflag [#allocation7], %s267
          %s269 = sand.u32 %s98, 1
          %s270 = scalar_lea.vmem [#allocation6], %s269
          %272 = dma.done %s268, 16
        $region52: #{tpu_custom_call.1} parent=43 // pred_fallthru
          _
      $region44: #{tpu_custom_call.1} parent=5 // pred_fallthru
        _
    $region6: #{tpu_custom_call.1} parent=1 // loop_footer
      %s22 = sadd.s32 1, %s18
    $region7: #{tpu_custom_call.1} parent=1 // loop_footer_branch
      %17 = sbr.rel target = $region3
    $region8: #{tpu_custom_call.1} parent=1 // loop_exit
      _
    %273 = vsyncpa [#allocation3], 1
    %s274 = scalar_lea.sflag [#allocation3], 1
    %275 = vsyncpa %s274, 1
    %276 = vsyncpa [#allocation4], 1
    %s277 = scalar_lea.sflag [#allocation4], 1
    %278 = vsyncpa %s277, 1
    %279 = vsyncpa [#allocation7], 1
    %s280 = scalar_lea.sflag [#allocation7], 1
    %281 = vsyncpa %s280, 1

</llo_original>
